<compile_context>
chip_gen: v7x
topology: tpu7x:2x2x1
jax: 0.10.0
libtpu: 0.0.40
codegen_flags: <defaults>
</compile_context>

<pallas_src>
import jax
import jax.numpy as jnp
from jax.experimental import pallas as pl
from jax.experimental.pallas import tpu as pltpu

_LANE = 128
_MAX_TN = 8192   # lane-tile ceiling; >2048 pays on v6e, bounded by VMEM elsewhere


def _round_up(a, m):
    return -(-a // m) * m


def _vmem_limit_bytes():
    """Chip-aware scoped-VMEM limit.

    v5e/v6e: 128 MiB physical -> ~96 MiB limit; v7x: 64 MiB per TensorCore
    (both cores active with 'parallel' grid axes) -> ~48 MiB.  Conservative
    fallback if the query is unavailable.
    """
    try:
        cap = pltpu.get_tpu_info().vmem_capacity_bytes
    except Exception:
        cap = 64 * 1024 * 1024
    return max(32 * 1024 * 1024, min(int(cap * 3 // 4), 112 * 1024 * 1024))


def _choose_tiles(B, C, N, itemsize, vmem_limit):
    """Pick (TB, TN) so the working set fits comfortably in scoped VMEM.

    Working set per block = double-buffered input + output tiles (4x block in
    the I/O dtype) plus ~3 block-sized fp32 intermediates (x upcast, x*x, y).
    """
    sizing_budget = int(vmem_limit * 0.55)          # headroom for compiler scratch
    bytes_per_elem = 4 * itemsize + 3 * 4
    max_elems = max(sizing_budget // bytes_per_elem, _LANE)
    if N <= _LANE:
        tn = N                                       # full last dim is always legal
    else:
        tn_cap = max(_LANE, (max_elems // max(C, 1)) // _LANE * _LANE)
        tn = min(_round_up(N, _LANE), tn_cap, _MAX_TN)
    tb = max(1, min(B, max_elems // max(C * tn, 1)))
    return tb, tn


def _deepnorm_kernel(eps, inv_c, fused_fn):
    def kernel(x_ref, g_ref, b_ref, o_ref):
        # Load + upcast once per block; all math in fp32.
        x = x_ref[...].astype(jnp.float32)                  # (TB, C, TN)
        g = g_ref[...]                                       # (1, C, 1) fp32, resident
        b = b_ref[...]                                       # (1, C, 1) fp32, resident

        # Single-pass moments over the channel axis (axis=1).
        mean = jnp.sum(x, axis=1, keepdims=True) * inv_c     # (TB, 1, TN)
        ex2 = jnp.sum(x * x, axis=1, keepdims=True) * inv_c
        var = jnp.maximum(ex2 - mean * mean, 0.0)            # clamp cancellation
        inv = jax.lax.rsqrt(var + eps)                       # EUP slot (free-ish)

        c2 = mean * inv                                      # per-column, small
        y = (x * inv - c2) * g + b
        if fused_fn is not None:
            y = fused_fn(y)                                  # fused elementwise epilogue
        o_ref[...] = y.astype(o_ref.dtype)
    return kernel


def _deepnorm_call(x, g32, b32, eps, fused_fn):
    B, C, N = x.shape
    itemsize = jnp.dtype(x.dtype).itemsize
    vmem_limit = _vmem_limit_bytes()
    tb, tn = _choose_tiles(B, C, N, itemsize, vmem_limit)
    grid = (pl.cdiv(B, tb), pl.cdiv(N, tn))                  # ragged last blocks OK

    kernel = _deepnorm_kernel(eps, 1.0 / C, fused_fn)
    return pl.pallas_call(
        kernel,
        out_shape=jax.ShapeDtypeStruct((B, C, N), x.dtype),
        grid_spec=pltpu.PrefetchScalarGridSpec(
            num_scalar_prefetch=0,
            grid=grid,
            in_specs=[
                pl.BlockSpec((tb, C, tn), lambda i, j: (i, 0, j)),  # x tile
                pl.BlockSpec((1, C, 1), lambda i, j: (0, 0, 0)),    # g (resident)
                pl.BlockSpec((1, C, 1), lambda i, j: (0, 0, 0)),    # b (resident)
            ],
            out_specs=pl.BlockSpec((tb, C, tn), lambda i, j: (i, 0, j)),
        ),
        compiler_params=pltpu.CompilerParams(
            dimension_semantics=("parallel", "parallel"),
            vmem_limit_bytes=vmem_limit),
    )(x, g32, b32)


def deepnorm_forward(x, g, b, fn=None, eps=1e-5, fuse_fn=True):
    """DeepNorm forward: LayerNorm over channels of x (B, C, N), then fn.

    x: (B, C, N); g, b: (1, C, 1).  If `fn` is elementwise it is fused into the
    kernel epilogue; otherwise pass fuse_fn=False to apply it afterwards.
    """
    B, C, N = x.shape
    g32 = jnp.asarray(g, jnp.float32).reshape(1, C, 1)
    b32 = jnp.asarray(b, jnp.float32).reshape(1, C, 1)
    fused = fn if (fuse_fn and fn is not None) else None

    if N < _LANE and B > 1 and B * N >= 2 * _LANE:
        # Lane-dense fold: a last dim < 128 means masked partial stores and
        # N/128 lane utilization; fold batch onto the lane axis (layout
        # plumbing -- one transpose each way) and run the same kernel on
        # (1, C, B*N).  Columns stay independent, so the normalization is
        # unchanged.
        xf = jnp.transpose(x, (1, 0, 2)).reshape(1, C, B * N)
        out = _deepnorm_call(xf, g32, b32, eps, fused)
        out = jnp.transpose(out.reshape(C, B, N), (1, 0, 2))
    else:
        out = _deepnorm_call(x, g32, b32, eps, fused)

    if fn is not None and fused is None:
        out = fn(out)     # non-elementwise fn: separate JAX op
    return out


def _reference(x, g, b, fn=None, eps=1e-5):
    x32 = x.astype(jnp.float32)
    mean = jnp.mean(x32, axis=1, keepdims=True)
    var = jnp.mean((x32 - mean) ** 2, axis=1, keepdims=True)
    y = (x32 - mean) / jnp.sqrt(var + eps) * g + b
    if fn is not None:
        y = fn(y)
    return y.astype(x.dtype)


if __name__ == "__main__":
    key = jax.random.PRNGKey(0)
    kx, kg, kb, kx2, kx3, kx4 = jax.random.split(key, 6)

    # Case 1: tiny NCL shape matching the module's convention (no fold, one block).
    B, C, N = 2, 4, 16
    x = jax.random.normal(kx, (B, C, N), dtype=jnp.float32)
    g = jnp.ones((1, C, 1), jnp.float32) + 0.01 * jax.random.normal(kg, (1, C, 1))
    b = jnp.zeros((1, C, 1), jnp.float32) + 0.01 * jax.random.normal(kb, (1, C, 1))
    out = jax.block_until_ready(deepnorm_forward(x, g, b))
    ref = _reference(x, g, b)
    assert out.shape == (B, C, N)
    assert jnp.allclose(out, ref, atol=1e-5, rtol=1e-5), "mismatch (case 1)"

    # Case 2: ragged lane tiling (N not a multiple of 128, no pad/slice) +
    # fused elementwise fn in the epilogue.
    B2, C2, N2 = 3, 8, 200
    x2 = jax.random.normal(kx2, (B2, C2, N2), dtype=jnp.float32)
    g2 = jnp.ones((1, C2, 1), jnp.float32)
    b2 = jnp.zeros((1, C2, 1), jnp.float32)
    out2 = jax.block_until_ready(deepnorm_forward(x2, g2, b2, fn=jnp.tanh))
    ref2 = _reference(x2, g2, b2, fn=jnp.tanh)
    assert out2.shape == (B2, C2, N2)
    assert jnp.allclose(out2, ref2, atol=1e-5, rtol=1e-5), "mismatch (case 2)"

    # Case 3: small-N lane-dense fold path (B*N folded onto the lane axis).
    B3, C3, N3 = 16, 8, 32
    x3 = jax.random.normal(kx3, (B3, C3, N3), dtype=jnp.float32)
    g3 = 1.0 + 0.01 * jax.random.normal(kg, (1, C3, 1))
    b3 = 0.01 * jax.random.normal(kb, (1, C3, 1))
    out3 = jax.block_until_ready(deepnorm_forward(x3, g3, b3))
    ref3 = _reference(x3, g3, b3)
    assert out3.shape == (B3, C3, N3)
    assert jnp.allclose(out3, ref3, atol=1e-5, rtol=1e-5), "mismatch (case 3)"

    # Case 4: bf16 I/O (fp32 math inside the kernel).
    B4, C4, N4 = 2, 16, 256
    x4 = jax.random.normal(kx4, (B4, C4, N4), dtype=jnp.bfloat16)
    g4 = jnp.ones((1, C4, 1), jnp.float32)
    b4 = jnp.zeros((1, C4, 1), jnp.float32)
    out4 = jax.block_until_ready(deepnorm_forward(x4, g4, b4))
    ref4 = _reference(x4, g4, b4)
    assert out4.dtype == jnp.bfloat16
    assert jnp.allclose(out4.astype(jnp.float32), ref4.astype(jnp.float32),
                        atol=5e-2, rtol=5e-2), "mismatch (case 4)"

    print("KERNEL_OK")
</pallas_src>

<mosaic_0001>
module attributes {stable_mosaic.version = 11 : i64} {
  func.func @kernel(%arg0: i32, %arg1: i32, %arg2: memref<2x4x16xf32, #tpu.memory_space<vmem>>, %arg3: memref<1x4x1xf32, #tpu.memory_space<vmem>>, %arg4: memref<1x4x1xf32, #tpu.memory_space<vmem>>, %arg5: memref<2x4x16xf32, #tpu.memory_space<vmem>>) attributes {dimension_semantics = [#tpu.dimension_semantics<parallel>, #tpu.dimension_semantics<parallel>], iteration_bounds = array<i64: 1, 1>, scalar_prefetch = 0 : i64, scratch_operands = 0 : i64, tpu.core_type = #tpu.core_type<tc>, window_params = [{transform_indices = @transform_0, window_bounds = array<i64: 2, 4, 16>}, {pipeline_mode = #tpu.pipeline_mode<synchronous>, transform_indices = @transform_1, window_bounds = array<i64: 1, 4, 1>}, {pipeline_mode = #tpu.pipeline_mode<synchronous>, transform_indices = @transform_2, window_bounds = array<i64: 1, 4, 1>}, {transform_indices = @transform_3, window_bounds = array<i64: 2, 4, 16>}]} {
    %c0 = arith.constant 0 : index
    %c0_0 = arith.constant 0 : index
    %c0_1 = arith.constant 0 : index
    %0 = vector.load %arg2[%c0, %c0_0, %c0_1] : memref<2x4x16xf32, #tpu.memory_space<vmem>>, vector<2x4x16xf32>
    %c0_2 = arith.constant 0 : index
    %c0_3 = arith.constant 0 : index
    %c0_4 = arith.constant 0 : index
    %1 = vector.load %arg3[%c0_2, %c0_3, %c0_4] : memref<1x4x1xf32, #tpu.memory_space<vmem>>, vector<1x4x1xf32>
    %c0_5 = arith.constant 0 : index
    %c0_6 = arith.constant 0 : index
    %c0_7 = arith.constant 0 : index
    %2 = vector.load %arg4[%c0_5, %c0_6, %c0_7] : memref<1x4x1xf32, #tpu.memory_space<vmem>>, vector<1x4x1xf32>
    %cst = arith.constant dense<0.000000e+00> : vector<2x16xf32>
    %3 = vector.multi_reduction <add>, %0, %cst [1] : vector<2x4x16xf32> to vector<2x16xf32>
    %4 = vector.shape_cast %3 : vector<2x16xf32> to vector<2x1x16xf32>
    %cst_8 = arith.constant 2.500000e-01 : f32
    %5 = vector.broadcast %cst_8 : f32 to vector<2x1x16xf32>
    %6 = arith.mulf %4, %5 : vector<2x1x16xf32>
    %7 = arith.mulf %0, %0 : vector<2x4x16xf32>
    %cst_9 = arith.constant dense<0.000000e+00> : vector<2x16xf32>
    %8 = vector.multi_reduction <add>, %7, %cst_9 [1] : vector<2x4x16xf32> to vector<2x16xf32>
    %9 = vector.shape_cast %8 : vector<2x16xf32> to vector<2x1x16xf32>
    %cst_10 = arith.constant 2.500000e-01 : f32
    %10 = vector.broadcast %cst_10 : f32 to vector<2x1x16xf32>
    %11 = arith.mulf %9, %10 : vector<2x1x16xf32>
    %12 = arith.mulf %6, %6 : vector<2x1x16xf32>
    %13 = arith.subf %11, %12 : vector<2x1x16xf32>
    %cst_11 = arith.constant 0.000000e+00 : f32
    %14 = vector.broadcast %cst_11 : f32 to vector<2x1x16xf32>
    %15 = arith.maximumf %13, %14 : vector<2x1x16xf32>
    %cst_12 = arith.constant 9.99999974E-6 : f32
    %16 = vector.broadcast %cst_12 : f32 to vector<2x1x16xf32>
    %17 = arith.addf %15, %16 : vector<2x1x16xf32>
    %18 = math.rsqrt %17 : vector<2x1x16xf32>
    %19 = arith.mulf %6, %18 : vector<2x1x16xf32>
    %20 = vector.broadcast %18 : vector<2x1x16xf32> to vector<2x4x16xf32>
    %21 = arith.mulf %0, %20 : vector<2x4x16xf32>
    %22 = vector.broadcast %19 : vector<2x1x16xf32> to vector<2x4x16xf32>
    %23 = arith.subf %21, %22 : vector<2x4x16xf32>
    %24 = vector.broadcast %1 : vector<1x4x1xf32> to vector<2x4x16xf32>
    %25 = arith.mulf %23, %24 : vector<2x4x16xf32>
    %26 = vector.broadcast %2 : vector<1x4x1xf32> to vector<2x4x16xf32>
    %27 = arith.addf %25, %26 : vector<2x4x16xf32>
    %c0_13 = arith.constant 0 : index
    %c0_14 = arith.constant 0 : index
    %c0_15 = arith.constant 0 : index
    %28 = vector.load %arg5[%c0_13, %c0_14, %c0_15] : memref<2x4x16xf32, #tpu.memory_space<vmem>>, vector<2x4x16xf32>
    tpu.vector_store %arg5[%c0_13, %c0_14, %c0_15], %27 {strides = array<i32>} : memref<2x4x16xf32, #tpu.memory_space<vmem>>, vector<2x4x16xf32>,
    return
  }
  func.func @transform_0(%arg0: i32, %arg1: i32) -> (i32, i32, i32) {
    %c0_i32 = arith.constant 0 : i32
    %c0_i32_0 = arith.constant 0 : i32
    return %arg0, %c0_i32, %arg1 : i32, i32, i32
  }
  func.func @transform_1(%arg0: i32, %arg1: i32) -> (i32, i32, i32) {
    %c0_i32 = arith.constant 0 : i32
    %c0_i32_0 = arith.constant 0 : i32
    %c0_i32_1 = arith.constant 0 : i32
    %c0_i32_2 = arith.constant 0 : i32
    return %c0_i32, %c0_i32_0, %c0_i32_1 : i32, i32, i32
  }
  func.func @transform_2(%arg0: i32, %arg1: i32) -> (i32, i32, i32) {
    %c0_i32 = arith.constant 0 : i32
    %c0_i32_0 = arith.constant 0 : i32
    %c0_i32_1 = arith.constant 0 : i32
    %c0_i32_2 = arith.constant 0 : i32
    return %c0_i32, %c0_i32_0, %c0_i32_1 : i32, i32, i32
  }
  func.func @transform_3(%arg0: i32, %arg1: i32) -> (i32, i32, i32) {
    %c0_i32 = arith.constant 0 : i32
    %c0_i32_0 = arith.constant 0 : i32
    return %arg0, %c0_i32, %arg1 : i32, i32, i32
  }
}

</mosaic_0001>

<llo_original>
// kernel: tpu_custom_call.1
$region0: #{tpu_custom_call.1}
  #allocation0 [shape = 'u32[]', space=smem, size = 0x4, offset = 0x4, fixed_abs, tag = 'smem constant byte address 0x4 - core index']
  #allocation1 [shape = 'u32[144,128]{1,0:T(1,128)}', space=vmem, size = 0x12000, scoped, tag = 'internal scratch']
  %s0 = inlined_call_operand.vmem [shape: f32[2,4,16], index: 0, kind: input, shape index: {}]
  %s1 = inlined_call_operand.vmem [shape: f32[1,4,1], index: 1, kind: input, shape index: {}]
  %s2 = inlined_call_operand.vmem [shape: f32[1,4,1], index: 2, kind: input, shape index: {}]
  %s3 = inlined_call_operand.hbm [shape: f32[2,4,16], index: 3, kind: output, shape index: {}]
  %s4 = sld [smem:[#allocation0]]
  $region22: #{tpu_custom_call.1} parent=0
    _
  %s6 = ssub.s32 1, %s4
  %s7 = scalar_select 0, %s6, %s4
  $region1: #{tpu_custom_call.1} parent=0
    #allocation2 [shape = 'u8[4096]{0}', space=vmem, size = 0x1000, scoped, tag = 'output window, operand 0, single buffered']
    #allocation3 [shape = 's32[1]{0}', space=sflag, size = 0x4, scoped, tag = 'scoped memory for tpu_custom_call.1']
    %8 = vsyncpa [#allocation3], 0
    // Predicated region
    $region2: #{tpu_custom_call.1} parent=1 // pred_check
      _
    $region3: #{tpu_custom_call.1} parent=1 // pred_check_branch
      %10 = sbr.rel (0) target = $region5
    $region4: #{tpu_custom_call.1} parent=1 // pred_region
      _
    $region5: #{tpu_custom_call.1} parent=1 // pred_fallthru
      _
    // Predicated region
    $region6: #{tpu_custom_call.1} parent=1 // pred_check
      _
    $region7: #{tpu_custom_call.1} parent=1 // pred_check_branch
      %12 = sbr.rel (0) target = $region9
    $region8: #{tpu_custom_call.1} parent=1 // pred_region
      _
    $region9: #{tpu_custom_call.1} parent=1 // pred_fallthru
      _
    // Predicated region
    $region10: #{tpu_custom_call.1} parent=1 // pred_check
      _
    $region11: #{tpu_custom_call.1} parent=1 // pred_check_branch
      %14 = sbr.rel (0) target = $region13
    $region12: #{tpu_custom_call.1} parent=1 // pred_region
      _
    $region13: #{tpu_custom_call.1} parent=1 // pred_fallthru
      _
    %v15 = vld [vmem:[%s0] sm:$0xf]
    %v16 = vld [vmem:[%s0 + $0x4] sm:$0xf]
    %v17 = vld [vmem:[%s1] sm:$0xf]
    %v18 = vld [vmem:[%s2] sm:$0xf]
    %vm19 = vcmask 125952
    %v20 = vsel %vm19, %v15, 0.0
    %v21 = vrot.slane %v20, 4
    %v22 = vadd.f32 %v20, %v21
    %v23 = vrot.slane %v22, 2
    %v24 = vadd.f32 %v22, %v23
    %v25 = vrot.slane %v24, 1
    %v26 = vadd.f32 %v24, %v25
    %v27 = vsel %vm19, %v16, 0.0
    %v28 = vrot.slane %v27, 4
    %v29 = vadd.f32 %v27, %v28
    %v30 = vrot.slane %v29, 2
    %v31 = vadd.f32 %v29, %v30
    %v32 = vrot.slane %v31, 1
    %v33 = vadd.f32 %v31, %v32
    %v34 = vmul.f32 %v26, 0.25
    %v35 = vmul.f32 %v33, 0.25
    %v36 = vmul.f32 %v15, %v15
    %v37 = vmul.f32 %v16, %v16
    %v38 = vsel %vm19, %v36, 0.0
    %v39 = vrot.slane %v38, 4
    %v40 = vadd.f32 %v38, %v39
    %v41 = vrot.slane %v40, 2
    %v42 = vadd.f32 %v40, %v41
    %v43 = vrot.slane %v42, 1
    %v44 = vadd.f32 %v42, %v43
    %v45 = vsel %vm19, %v37, 0.0
    %v46 = vrot.slane %v45, 4
    %v47 = vadd.f32 %v45, %v46
    %v48 = vrot.slane %v47, 2
    %v49 = vadd.f32 %v47, %v48
    %v50 = vrot.slane %v49, 1
    %v51 = vadd.f32 %v49, %v50
    %v52 = vmul.f32 %v44, 0.25
    %v53 = vmul.f32 %v51, 0.25
    %v54 = vmul.f32 %v34, %v34
    %v55 = vmul.f32 %v35, %v35
    %v56 = vsub.f32 %v52, %v54
    %v57 = vsub.f32 %v53, %v55
    %v58 = vmax.f32 %v56, 0.0
    %v59 = vmax.f32 %v57, 0.0
    %v60 = vadd.f32 %v58, 1e-05
    %v61 = vadd.f32 %v59, 1e-05
    %v62 = vrsqrt.pop %v60
    %v63 = vrsqrt.pop %v61
    %v64 = vmul.f32 %v34, %v62
    %v65 = vmul.f32 %v35, %v63
    %v66 = vmul.f32 %v15, %v62
    %v67 = vmul.f32 %v16, %v63
    %v68 = vsub.f32 %v66, %v64
    %v69 = vsub.f32 %v67, %v65
    %71 = vset.pattern.permute.xlu0 0
    %72 = vperm.xlu0 %71, %v17
    %v73 = vpop.permute.xlu0 %72
    %v75 = vmul.f32 %v68, %v73
    %v76 = vmul.f32 %v69, %v73
    %78 = vset.pattern.permute.xlu0 0
    %79 = vperm.xlu0 %78, %v18
    %v80 = vpop.permute.xlu0 %79
    %v82 = vadd.f32 %v75, %v80
    %v83 = vadd.f32 %v76, %v80
    %84 = vst.msk [vmem:[#allocation2] sm:$0xf] %vm19, %v82
    %85 = vst.msk [vmem:[#allocation2 + $0x4] sm:$0xf] %vm19, %v83
    // Predicated region
    $region14: #{tpu_custom_call.1} parent=1 // pred_check
      _
    $region15: #{tpu_custom_call.1} parent=1 // pred_check_branch
      %87 = sbr.rel (0) target = $region17
    $region16: #{tpu_custom_call.1} parent=1 // pred_region
      %s89 = ssub.s32 128, 128
      %90 = vsyncadd [#allocation3], %s89
      %s91 = sshll.u32 [#allocation2], 4
      %s92 = int_to_ptr.vmem [resolvable:$true] %s91
      %97 = dma.vmem_to_hbm [thread:$0]  %s92, 128, %s3, [#allocation3], 64, 64, 4
    $region17: #{tpu_custom_call.1} parent=1 // pred_fallthru
      _
    // Predicated region
    $region18: #{tpu_custom_call.1} parent=1 // pred_check
      _
    $region19: #{tpu_custom_call.1} parent=1 // pred_check_branch
      %99 = sbr.rel (0) target = $region21
    $region20: #{tpu_custom_call.1} parent=1 // pred_region
      %100 = dma.done [#allocation3], 128
    $region21: #{tpu_custom_call.1} parent=1 // pred_fallthru
      _
    %101 = vsyncpa [#allocation3], 1

</llo_original>
